<compile_context>
chip_gen: v5e
topology: v5e:2x2
jax: 0.10.0
libtpu: 0.0.40
codegen_flags: <defaults>
</compile_context>

<pallas_src>
import functools

import jax
import jax.numpy as jnp
from jax import lax
from jax.experimental import pallas as pl
from jax.experimental.pallas import tpu as pltpu  # noqa: F401  (kept for TPU-specific tuning)

NUM_LANDMARKS = 68
RIGHT_EYE = (36, 42)         # [36, 42)
LEFT_EYE = (42, 48)          # [42, 48)


def _pme_kernel(kpts_ref, out_ref, *, n_images):
    # kpts_ref: (2, 2, N, 68) f32 -- [fake/real, coord(x,y), image, landmark]
    fake = kpts_ref[0]                                               # (2, N, 68)
    real = kpts_ref[1]                                               # (2, N, 68)

    # Signed eye mask (+1/6 on left-eye lanes, -1/6 on right-eye lanes): fuses the two
    # eye means into a single cross-lane (XLU) reduction.  Built once (single grid step).
    lm = lax.broadcasted_iota(jnp.int32, (1, 1, NUM_LANDMARKS), 2)
    eye_mask = (
        ((lm >= LEFT_EYE[0]) & (lm < LEFT_EYE[1])).astype(jnp.float32)
        - ((lm >= RIGHT_EYE[0]) & (lm < RIGHT_EYE[1])).astype(jnp.float32)
    ) * (1.0 / 6.0)

    # Inter-ocular distance d per image (normalizer), from the real keypoints.
    eye_diff = jnp.sum(real * eye_mask, axis=-1, keepdims=True)      # (2, N, 1)
    d = jnp.sqrt(jnp.sum(eye_diff * eye_diff, axis=0))               # (N, 1)

    # Mean per-landmark euclidean error.
    diff = fake - real
    dist = jnp.sqrt(jnp.sum(diff * diff, axis=0))                    # (N, 68)
    err = jnp.sum(dist, axis=-1, keepdims=True) * (1.0 / NUM_LANDMARKS)  # (N, 1)

    # Exact divide; clamp d so a degenerate image (d == 0, which PyTorch would turn
    # into inf) cannot NaN-poison the batch mean.
    nme = err / jnp.maximum(d, 1e-12)                                # (N, 1)

    # Mean over images folded into the kernel: single (1,1) result, no external reduce.
    out_ref[...] = jnp.sum(nme, axis=0, keepdims=True) * (1.0 / n_images)


def pose_matching_loss(fake_kpts, real_kpts):
    """fake_kpts, real_kpts: (N, 68, 2) float32 landmarks.  Returns scalar G_PME."""
    n = fake_kpts.shape[0]

    # Single relayout (stack + transpose fuse in XLA): (2, 2, N, 68) =
    # [fake/real, coord, image, landmark].  Ideally the landmark-detector driver
    # would emit this coord-major layout directly and this op would disappear.
    kpts = jnp.transpose(
        jnp.stack([fake_kpts, real_kpts]).astype(jnp.float32), (0, 3, 1, 2))

    mean_nme = pl.pallas_call(
        functools.partial(_pme_kernel, n_images=n),
        out_shape=jax.ShapeDtypeStruct((1, 1), jnp.float32),
        grid=(1,),
        in_specs=[pl.BlockSpec((2, 2, n, NUM_LANDMARKS), lambda i: (0, 0, 0, 0))],
        out_specs=pl.BlockSpec((1, 1), lambda i: (0, 0)),
    )(kpts)
    return mean_nme[0, 0]


def _reference(fake_kpts, real_kpts):
    """Pure-JAX reference of the per-image NME, averaged (mirrors calc_metric)."""
    right = jnp.arange(*RIGHT_EYE)
    left = jnp.arange(*LEFT_EYE)
    d = jnp.sqrt(jnp.sum(
        (jnp.mean(real_kpts[:, left], axis=1) - jnp.mean(real_kpts[:, right], axis=1)) ** 2,
        axis=-1))                                                         # (N,)
    err = jnp.mean(jnp.sqrt(jnp.sum((fake_kpts - real_kpts) ** 2, axis=-1)), axis=-1)  # (N,)
    return jnp.mean(err / d)


if __name__ == "__main__":
    key = jax.random.PRNGKey(0)
    b, t, c, h, w = 2, 1, 3, 16, 16
    k_img_f, k_img_r, k_kp_f, k_kp_r = jax.random.split(key, 4)

    # module-interface tensors (feed the untranslatable detector; kept for shape fidelity)
    pred_target_imgs = jax.random.uniform(k_img_f, (b, t, c, h, w), jnp.float32, -1.0, 1.0)
    target_imgs = jax.random.uniform(k_img_r, (b, t, c, h, w), jnp.float32, -1.0, 1.0)

    # synthetic landmark-detector outputs: (b*t, 68, 2) pixel coords
    N = b * t
    real_kpts = jax.random.uniform(k_kp_r, (N, NUM_LANDMARKS, 2), jnp.float32, 0.0, float(w))
    fake_kpts = real_kpts + 0.5 * jax.random.normal(k_kp_f, (N, NUM_LANDMARKS, 2), jnp.float32)

    g_pme = pose_matching_loss(fake_kpts, real_kpts)
    g_pme = jax.block_until_ready(g_pme)

    ref = _reference(fake_kpts, real_kpts)
    assert jnp.allclose(g_pme, ref, rtol=1e-4, atol=1e-6), (g_pme, ref)

    losses_dict = {"G_PME": g_pme}
    print("KERNEL_OK")
</pallas_src>

<mosaic_0001>
module attributes {stable_mosaic.version = 11 : i64} {
  func.func @_pme_kernel(%arg0: i32, %arg1: memref<2x2x2x68xf32, #tpu.memory_space<vmem>>, %arg2: memref<1x1xf32, #tpu.memory_space<vmem>>) attributes {dimension_semantics = [#tpu.dimension_semantics<arbitrary>], iteration_bounds = array<i64: 1>, scalar_prefetch = 0 : i64, scratch_operands = 0 : i64, tpu.core_type = #tpu.core_type<tc>, window_params = [{pipeline_mode = #tpu.pipeline_mode<synchronous>, transform_indices = @transform_0, window_bounds = array<i64: 2, 2, 2, 68>}, {pipeline_mode = #tpu.pipeline_mode<synchronous>, transform_indices = @transform_1, window_bounds = array<i64: 1, 1>}]} {
    %c0 = arith.constant 0 : index
    %c0_0 = arith.constant 0 : index
    %c0_1 = arith.constant 0 : index
    %c0_2 = arith.constant 0 : index
    %0 = vector.load %arg1[%c0, %c0_0, %c0_1, %c0_2] : memref<2x2x2x68xf32, #tpu.memory_space<vmem>>, vector<1x2x2x68xf32>
    %1 = vector.shape_cast %0 : vector<1x2x2x68xf32> to vector<2x2x68xf32>
    %c1 = arith.constant 1 : index
    %c0_3 = arith.constant 0 : index
    %c0_4 = arith.constant 0 : index
    %c0_5 = arith.constant 0 : index
    %2 = vector.load %arg1[%c1, %c0_3, %c0_4, %c0_5] : memref<2x2x2x68xf32, #tpu.memory_space<vmem>>, vector<1x2x2x68xf32>
    %3 = vector.shape_cast %2 : vector<1x2x2x68xf32> to vector<2x2x68xf32>
    %4 = tpu.iota {dimensions = array<i32: 2>} : vector<1x1x68xi32>
    %c42_i32 = arith.constant 42 : i32
    %5 = vector.broadcast %c42_i32 : i32 to vector<1x1x68xi32>
    %6 = arith.cmpi sge, %4, %5 : vector<1x1x68xi32>
    %c48_i32 = arith.constant 48 : i32
    %7 = vector.broadcast %c48_i32 : i32 to vector<1x1x68xi32>
    %8 = arith.cmpi slt, %4, %7 : vector<1x1x68xi32>
    %9 = arith.andi %6, %8 : vector<1x1x68xi1>
    %10 = arith.extui %9 : vector<1x1x68xi1> to vector<1x1x68xi32>
    %11 = arith.sitofp %10 : vector<1x1x68xi32> to vector<1x1x68xf32>
    %c36_i32 = arith.constant 36 : i32
    %12 = vector.broadcast %c36_i32 : i32 to vector<1x1x68xi32>
    %13 = arith.cmpi sge, %4, %12 : vector<1x1x68xi32>
    %c42_i32_6 = arith.constant 42 : i32
    %14 = vector.broadcast %c42_i32_6 : i32 to vector<1x1x68xi32>
    %15 = arith.cmpi slt, %4, %14 : vector<1x1x68xi32>
    %16 = arith.andi %13, %15 : vector<1x1x68xi1>
    %17 = arith.extui %16 : vector<1x1x68xi1> to vector<1x1x68xi32>
    %18 = arith.sitofp %17 : vector<1x1x68xi32> to vector<1x1x68xf32>
    %19 = arith.subf %11, %18 : vector<1x1x68xf32>
    %cst = arith.constant 0.166666672 : f32
    %20 = vector.broadcast %cst : f32 to vector<1x1x68xf32>
    %21 = arith.mulf %19, %20 : vector<1x1x68xf32>
    %22 = vector.broadcast %21 : vector<1x1x68xf32> to vector<2x2x68xf32>
    %23 = arith.mulf %3, %22 : vector<2x2x68xf32>
    %cst_7 = arith.constant dense<0.000000e+00> : vector<2x2xf32>
    %24 = vector.multi_reduction <add>, %23, %cst_7 [2] : vector<2x2x68xf32> to vector<2x2xf32>
    %25 = vector.shape_cast %24 : vector<2x2xf32> to vector<2x2x1xf32>
    %26 = arith.mulf %25, %25 : vector<2x2x1xf32>
    %cst_8 = arith.constant dense<0.000000e+00> : vector<2x1xf32>
    %27 = vector.multi_reduction <add>, %26, %cst_8 [0] : vector<2x2x1xf32> to vector<2x1xf32>
    %28 = math.sqrt %27 : vector<2x1xf32>
    %29 = arith.subf %1, %3 : vector<2x2x68xf32>
    %30 = arith.mulf %29, %29 : vector<2x2x68xf32>
    %cst_9 = arith.constant dense<0.000000e+00> : vector<2x68xf32>
    %31 = vector.multi_reduction <add>, %30, %cst_9 [0] : vector<2x2x68xf32> to vector<2x68xf32>
    %32 = math.sqrt %31 : vector<2x68xf32>
    %cst_10 = arith.constant dense<0.000000e+00> : vector<2xf32>
    %33 = vector.multi_reduction <add>, %32, %cst_10 [1] : vector<2x68xf32> to vector<2xf32>
    %34 = vector.shape_cast %33 : vector<2xf32> to vector<2x1xf32>
    %cst_11 = arith.constant 0.0147058824 : f32
    %35 = vector.broadcast %cst_11 : f32 to vector<2x1xf32>
    %36 = arith.mulf %34, %35 : vector<2x1xf32>
    %cst_12 = arith.constant 9.99999996E-13 : f32
    %37 = vector.broadcast %cst_12 : f32 to vector<2x1xf32>
    %38 = arith.maximumf %28, %37 : vector<2x1xf32>
    %39 = arith.divf %36, %38 : vector<2x1xf32>
    %cst_13 = arith.constant dense<0.000000e+00> : vector<1xf32>
    %40 = vector.multi_reduction <add>, %39, %cst_13 [0] : vector<2x1xf32> to vector<1xf32>
    %41 = vector.shape_cast %40 : vector<1xf32> to vector<1x1xf32>
    %cst_14 = arith.constant 5.000000e-01 : f32
    %42 = vector.broadcast %cst_14 : f32 to vector<1x1xf32>
    %43 = arith.mulf %41, %42 : vector<1x1xf32>
    %c0_15 = arith.constant 0 : index
    %c0_16 = arith.constant 0 : index
    %44 = vector.load %arg2[%c0_15, %c0_16] : memref<1x1xf32, #tpu.memory_space<vmem>>, vector<1x1xf32>
    tpu.vector_store %arg2[%c0_15, %c0_16], %43 {strides = array<i32>} : memref<1x1xf32, #tpu.memory_space<vmem>>, vector<1x1xf32>,
    return
  }
  func.func @transform_0(%arg0: i32) -> (i32, i32, i32, i32) {
    %c0_i32 = arith.constant 0 : i32
    %c0_i32_0 = arith.constant 0 : i32
    %c0_i32_1 = arith.constant 0 : i32
    %c0_i32_2 = arith.constant 0 : i32
    %c0_i32_3 = arith.constant 0 : i32
    return %c0_i32, %c0_i32_0, %c0_i32_1, %c0_i32_2 : i32, i32, i32, i32
  }
  func.func @transform_1(%arg0: i32) -> (i32, i32) {
    %c0_i32 = arith.constant 0 : i32
    %c0_i32_0 = arith.constant 0 : i32
    %c0_i32_1 = arith.constant 0 : i32
    return %c0_i32, %c0_i32_0 : i32, i32
  }
}

</mosaic_0001>

<llo_original>
// kernel: tpu_custom_call.1
$region0: #{tpu_custom_call.1}
  #allocation0 [shape = 'u32[]', space=smem, size = 0x4, offset = 0x4, fixed_abs, tag = 'smem constant byte address 0x4 - core index']
  #allocation1 [shape = 'u32[72,128]{1,0:T(1,128)}', space=vmem, size = 0x9000, scoped, tag = 'internal scratch']
  %s0 = inlined_call_operand.hbm [shape: f32[2,2,2,68], index: 0, kind: input, shape index: {}]
  %s1 = inlined_call_operand.hbm [shape: f32[1,1], index: 1, kind: output, shape index: {}]
  %s2 = sld [smem:[#allocation0]]
  $region18: #{tpu_custom_call.1} parent=0
    _
  %s4 = ssub.s32 1, %s2
  %s5 = scalar_select 0, %s4, %s2
  $region1: #{tpu_custom_call.1} parent=0
    #allocation2 [shape = 'u8[4096]{0}', space=vmem, size = 0x1000, scoped, tag = 'input window, operand 0, single buffered']
    #allocation3 [shape = 's32[1]{0}', space=sflag, size = 0x4, scoped, tag = 'scoped memory for tpu_custom_call.1']
    #allocation4 [shape = 's32[1]{0}', space=sflag, size = 0x4, scoped, tag = 'scoped memory for tpu_custom_call.1']
    #allocation5 [shape = 'u8[512]{0}', space=vmem, size = 0x400, scoped, tag = 'output window, operand 0, single buffered']
    %6 = vsyncpa [#allocation3], 0
    %7 = vsyncpa [#allocation4], 0
    // Predicated region
    $region2: #{tpu_custom_call.1} parent=1 // pred_check
      _
    $region3: #{tpu_custom_call.1} parent=1 // pred_check_branch
      %9 = sbr.rel (0) target = $region5
    $region4: #{tpu_custom_call.1} parent=1 // pred_region
      %11 = vsyncadd [#allocation3], 0
      %s12 = sshll.u32 %s0, 4
      %s13 = int_to_ptr.hbm [resolvable:$true] %s12
      %s14 = sshll.u32 [#allocation2], 4
      %s15 = int_to_ptr.vmem [resolvable:$true] %s14
      %20 = dma.hbm_to_vmem [thread:$0]  %s13, 128, %s15, [#allocation3], 32, 32, 2
    $region5: #{tpu_custom_call.1} parent=1 // pred_fallthru
      _
    // Predicated region
    $region6: #{tpu_custom_call.1} parent=1 // pred_check
      _
    $region7: #{tpu_custom_call.1} parent=1 // pred_check_branch
      %22 = sbr.rel (0) target = $region9
    $region8: #{tpu_custom_call.1} parent=1 // pred_region
      %24 = dma.done [#allocation3], 128
    $region9: #{tpu_custom_call.1} parent=1 // pred_fallthru
      _
    %v25 = vld [vmem:[#allocation2] sm:$0x3]
    %v26 = vld [vmem:[#allocation2 + $0x2] sm:$0x3]
    %s27 = scalar_lea.vmem [#allocation2], 4
    %v28 = vld [vmem:[%s27] sm:$0x3]
    %v29 = vld [vmem:[%s27 + $0x2] sm:$0x3]
    %v30 = vlaneseq
    %v31 = vand.u32 %v30, 127
    %vm32 = vcmp.ge.s32.totalorder %v31, 42
    %vm33 = vcmp.lt.s32.totalorder %v31, 48
    %vm34 = vmand %vm32, %vm33
    %v35 = vsel %vm34, 1, 0
    %v36 = vcvt.s32.f32 %v35
    %vm37 = vcmp.ge.s32.totalorder %v31, 36
    %vm38 = vcmp.lt.s32.totalorder %v31, 42
    %vm39 = vmand %vm37, %vm38
    %v40 = vsel %vm39, 1, 0
    %v41 = vcvt.s32.f32 %v40
    %v42 = vsub.f32 %v36, %v41
    %v43 = vmul.f32 %v42, 0.16666667
    %v44 = vmul.f32 %v28, %v43
    %v45 = vmul.f32 %v29, %v43
    %vm46 = vcmask 549888
    %v47 = vsel %vm46, %v44, 0.0
    %48 = vadd.xlane.f32.xlu0 %v47
    %v49 = vpop.xlane.xlu0 %48
    %v50 = vsel %vm46, %v45, 0.0
    %51 = vadd.xlane.f32.xlu0 %v50
    %v52 = vpop.xlane.xlu0 %51
    %v53 = vmul.f32 %v49, %v49
    %v54 = vmul.f32 %v52, %v52
    %vm55 = vcmask 1041408
    %v56 = vsel %vm55, %v53, 0.0
    %v57 = vsel %vm55, %v54, 0.0
    %v58 = vadd.f32 %v56, %v57
    %v59 = vrsqrt.pop %v58
    %v60 = vmul.f32 %v59, %v58
    %v61 = vmul.f32 %v60, %v59
    %v62 = vmul.f32 0.5, %v61
    %v63 = vsub.f32 1.5, %v62
    %v64 = vmul.f32 %v59, %v63
    %v65 = vmul.f32 %v58, %v64
    %vm66 = vcmp.eq.f32.partialorder %v58, inf
    %v67 = vsel %vm66, %v58, %v65
    %vm68 = vcmp.eq.f32.partialorder %v58, 0.0
    %v69 = vand.u32 %v58, 2147483648
    %v70 = vsel %vm68, %v69, %v67
    %v71 = vsub.f32 %v25, %v28
    %v72 = vsub.f32 %v26, %v29
    %v73 = vmul.f32 %v71, %v71
    %v74 = vmul.f32 %v72, %v72
    %v75 = vsel %vm46, %v73, 0.0
    %v76 = vsel %vm46, %v74, 0.0
    %v77 = vadd.f32 %v75, %v76
    %v78 = vrsqrt.pop %v77
    %v79 = vmul.f32 %v78, %v77
    %v80 = vmul.f32 %v79, %v78
    %v81 = vmul.f32 0.5, %v80
    %v82 = vsub.f32 1.5, %v81
    %v83 = vmul.f32 %v78, %v82
    %v84 = vmul.f32 %v77, %v83
    %vm85 = vcmp.eq.f32.partialorder %v77, inf
    %v86 = vsel %vm85, %v77, %v84
    %vm87 = vcmp.eq.f32.partialorder %v77, 0.0
    %v88 = vand.u32 %v77, 2147483648
    %v89 = vsel %vm87, %v88, %v86
    %v90 = vsel %vm46, %v89, 0.0
    %91 = vadd.xlane.f32.xlu0 %v90
    %v92 = vpop.xlane.xlu0 %91
    %v93 = vmul.f32 %v92, 0.014705882
    %v94 = vmax.f32 %v70, 1e-12
    %v95 = vrcp.pop %v94
    %v96 = vmul.f32 %v94, %v95
    %v97 = vsub.f32 1.0, %v96
    %v98 = vmul.f32 %v95, %v97
    %v99 = vadd.f32 %v95, %v98
    %vm100 = vweird.f32 %v94
    %vm101 = vweird.f32 %v95
    %vm102 = vmor %vm100, %vm101
    %v103 = vsel %vm102, %v95, %v99
    %v104 = vand.u32 2147483647, %v94
    %vm105 = vcmp.eq.f32.partialorder %v104, 8.507059e+37
    %v106 = vand.u32 %v94, 2147483648
    %v107 = vor.u32 1.1754944e-38, %v106
    %v108 = vsel %vm105, %v107, %v103
    %v109 = vmul.f32 %v93, %v108
    %v110 = vsel %vm55, %v109, 0.0
    %v111 = vrot.slane %v110, 4
    %v112 = vadd.f32 %v110, %v111
    %v113 = vrot.slane %v112, 2
    %v114 = vadd.f32 %v112, %v113
    %v115 = vrot.slane %v114, 1
    %v116 = vadd.f32 %v114, %v115
    %v117 = vmul.f32 %v116, 0.5
    %vm118 = vcmask 0
    %119 = vst.msk [vmem:[#allocation5] sm:$0x1] %vm118, %v117
    // Predicated region
    $region10: #{tpu_custom_call.1} parent=1 // pred_check
      _
    $region11: #{tpu_custom_call.1} parent=1 // pred_check_branch
      %121 = sbr.rel (0) target = $region13
    $region12: #{tpu_custom_call.1} parent=1 // pred_region
      %123 = vsyncadd [#allocation4], 0
      %s125 = sshll.u32 [#allocation5], 4
      %s126 = int_to_ptr.vmem [resolvable:$true] %s125
      %s127 = sshll.u32 %s1, 4
      %s128 = int_to_ptr.hbm [resolvable:$true] %s127
      %130 = dma.vmem_to_hbm [thread:$0]  %s126, 16, %s128, [#allocation4]
    $region13: #{tpu_custom_call.1} parent=1 // pred_fallthru
      _
    // Predicated region
    $region14: #{tpu_custom_call.1} parent=1 // pred_check
      _
    $region15: #{tpu_custom_call.1} parent=1 // pred_check_branch
      %132 = sbr.rel (0) target = $region17
    $region16: #{tpu_custom_call.1} parent=1 // pred_region
      %134 = dma.done [#allocation4], 16
    $region17: #{tpu_custom_call.1} parent=1 // pred_fallthru
      _
    %135 = vsyncpa [#allocation3], 1
    %136 = vsyncpa [#allocation4], 1

</llo_original>
